<compile_context>
chip_gen: v7x
topology: tpu7x:2x2x1
jax: 0.10.0
libtpu: 0.0.40
codegen_flags: <defaults>
</compile_context>

<pallas_src>
import functools

import jax
import jax.numpy as jnp
from jax.experimental import pallas as pl
from jax.experimental.pallas import tpu as pltpu

_LANES = 128
_TILE_BYTES = 8 * 1024 * 1024      # target HBM bytes per input per grid step
_CHUNK_ROWS = 1024                 # in-kernel chunk: ~0.5 MiB f32 temporaries
_VMEM_LIMIT = 48 * 1024 * 1024     # > 2 in x 2 buf x 8 MiB; < v7x 64 MiB phys


def _num_tensorcores_per_chip() -> int:
    """2 on TPU7x-class chips (2 TensorCores/chip), else 1 (v2..v6e)."""
    try:
        kind = jax.devices()[0].device_kind.lower()
    except Exception:
        return 1
    return 2 if ("v7" in kind or "tpu7" in kind) else 1


def _per_pixel_loss_kernel(nrows_ref, o_ref, t_ref, out_ref, acc_ref, *,
                           loss_type, block_rows, chunk_rows):
    p = pl.program_id(0)             # parts axis (megacore on 2-TC chips)
    i = pl.program_id(1)             # sequential reduction axis within a part
    steps = pl.num_programs(1)

    @pl.when(i == 0)
    def _init():
        acc_ref[...] = jnp.zeros_like(acc_ref)

    nrows = nrows_ref[0]
    # Flat row offset of this tile, computed from the UNCLAMPED grid position
    # so clamped overhang steps mask to exactly zero.
    row_start = (p * steps + i) * block_rows

    n_chunks = block_rows // chunk_rows      # static python int
    tail = block_rows % chunk_rows           # static python int

    def _accum_chunk(c_row, crows, masked):
        o_c = o_ref[pl.ds(c_row, crows), :].astype(jnp.float32)
        t_c = t_ref[pl.ds(c_row, crows), :].astype(jnp.float32)
        diff = o_c - t_c
        val = diff * diff if loss_type == "mse" else jnp.abs(diff)
        if masked:
            rid = (row_start + c_row
                   + jax.lax.broadcasted_iota(jnp.int32, val.shape, 0))
            val = jnp.where(rid < nrows, val, 0.0)
        # Per-chunk sublane reduce into the tiny accumulator (XLU/vreg adds);
        # no full-tile accumulator stores.
        acc_ref[...] += jnp.sum(val, axis=0, keepdims=True)

    def _run(masked):
        @pl.loop(0, n_chunks)
        def _chunks(c):
            off = c * chunk_rows
            if chunk_rows % 8 == 0:
                off = pl.multiple_of(off, chunk_rows)
            _accum_chunk(off, chunk_rows, masked)
        if tail:
            _accum_chunk(n_chunks * chunk_rows, tail, masked)

    is_interior = row_start + block_rows <= nrows

    @pl.when(is_interior)
    def _fast():   # interior tile: no per-element mask work at all
        _run(masked=False)

    @pl.when(jnp.logical_not(is_interior))
    def _edge():   # ragged-tail / clamped-overhang tile: mask rows >= nrows
        _run(masked=True)

    @pl.when(i == steps - 1)
    def _finalize():
        out_ref[...] = acc_ref[...]   # (1, 128) lane-dense per-part partial


def per_pixel_loss(out, target, loss_type="mse", reduction="mean", *,
                   block_rows=None, num_parts=None):
    """JAX/Pallas equivalent of PerPixelLoss(type=loss_type, reduction=reduction).

    out, target: arrays of identical shape (e.g. NCHW). Returns a scalar.
    """
    if loss_type not in ("mse", "l1"):
        print("Invalid input for type parameter, automatically defaulted to MSE\n")
        loss_type = "mse"
    assert out.shape == target.shape

    n_true = out.size
    o_flat = out.reshape(-1)
    t_flat = target.reshape(-1)

    rem = n_true % _LANES
    if rem:
        # TODO(synk): this small zero-pad copies both tensors once in HBM; a
        # 1-D pl.ANY + manual-DMA kernel could avoid it, but image tensors
        # almost always have element counts divisible by 128.
        pad = _LANES - rem
        o_flat = jnp.pad(o_flat, (0, pad))
        t_flat = jnp.pad(t_flat, (0, pad))

    rows = o_flat.shape[0] // _LANES
    o2 = o_flat.reshape(rows, _LANES)
    t2 = t_flat.reshape(rows, _LANES)

    if block_rows is None:
        # Dtype-scaled so HBM bytes per grid step stay ~_TILE_BYTES per input
        # (16384 rows for f32, 32768 for bf16).
        block_rows = max(8, _TILE_BYTES // (_LANES * o2.dtype.itemsize))
    if block_rows >= rows:
        block_rows = rows                              # full extent: always legal
    else:
        block_rows = max(8, (block_rows // 8) * 8)     # keep (8,128) tiling legal
    chunk_rows = min(_CHUNK_ROWS, block_rows)

    total_blocks = pl.cdiv(rows, block_rows)
    if num_parts is None:
        num_parts = _num_tensorcores_per_chip()        # 1 on v5e/v6e, 2 on v7x
    num_parts = max(1, min(num_parts, total_blocks))
    steps_per_part = pl.cdiv(total_blocks, num_parts)

    def in_map(p, i, nrows_ref):
        idx = p * steps_per_part + i
        # Clamp overhang steps (only when total_blocks % num_parts != 0) to the
        # previous step's block of the same part: identical block index means
        # the pipeline skips the re-DMA, and the kernel masks the recompute to
        # zero, so no extra HBM traffic is generated.
        idx = jnp.minimum(idx, total_blocks - 1)
        return (idx, 0)

    n_rows_arr = jnp.array([rows], dtype=jnp.int32)

    in_bytes = int(o2.size * o2.dtype.itemsize + t2.size * t2.dtype.itemsize)
    cost = pl.CostEstimate(flops=3 * int(n_true), transcendentals=0,
                           bytes_accessed=in_bytes)

    partials = pl.pallas_call(
        functools.partial(_per_pixel_loss_kernel, loss_type=loss_type,
                          block_rows=block_rows, chunk_rows=chunk_rows),
        out_shape=jax.ShapeDtypeStruct((num_parts, _LANES), jnp.float32),
        grid_spec=pltpu.PrefetchScalarGridSpec(
            num_scalar_prefetch=1,
            grid=(num_parts, steps_per_part),
            in_specs=[
                pl.BlockSpec((block_rows, _LANES), in_map),
                pl.BlockSpec((block_rows, _LANES), in_map),
            ],
            out_specs=pl.BlockSpec((1, _LANES), lambda p, i, nrows_ref: (p, 0)),
            scratch_shapes=[pltpu.VMEM((1, _LANES), jnp.float32)],
        ),
        compiler_params=pltpu.CompilerParams(
            dimension_semantics=("parallel", "arbitrary"),
            vmem_limit_bytes=_VMEM_LIMIT,
        ),
        cost_estimate=cost,
    )(n_rows_arr, o2, t2)

    loss_sum = jnp.sum(partials)

    if reduction == "mean":
        return loss_sum / jnp.float32(n_true)
    elif reduction == "sum":
        return loss_sum
    else:
        # TODO(synk): reduction='none' (elementwise output) not wired through
        # the accumulator kernel; PyTorch default reduction is 'mean'.
        raise NotImplementedError("reduction='none' not implemented")


if __name__ == "__main__":
    key = jax.random.PRNGKey(0)
    k1, k2, k3, k4, k5, k6 = jax.random.split(key, 6)

    # NCHW, element count divisible by 128 -> no pad copy.
    x = jax.random.normal(k1, (2, 4, 16, 16), dtype=jnp.float32)
    y = jax.random.normal(k2, (2, 4, 16, 16), dtype=jnp.float32)

    mse = jax.block_until_ready(per_pixel_loss(x, y, loss_type="mse"))
    l1 = jax.block_until_ready(per_pixel_loss(x, y, loss_type="l1"))
    assert jnp.allclose(mse, jnp.mean((x - y) ** 2), rtol=1e-5, atol=1e-6)
    assert jnp.allclose(l1, jnp.mean(jnp.abs(x - y)), rtol=1e-5, atol=1e-6)

    # Multi-block / multi-part / clamped-overhang / ragged-tail mask path with
    # forced small blocks (20 rows, block of 8 -> 3 blocks over 2 parts).
    a = jax.random.normal(k3, (2, 4, 16, 20), dtype=jnp.float32)
    b = jax.random.normal(k4, (2, 4, 16, 20), dtype=jnp.float32)
    mse2 = jax.block_until_ready(
        per_pixel_loss(a, b, loss_type="mse", block_rows=8, num_parts=2))
    l12 = jax.block_until_ready(
        per_pixel_loss(a, b, loss_type="l1", block_rows=8, num_parts=2))
    assert jnp.allclose(mse2, jnp.mean((a - b) ** 2), rtol=1e-5, atol=1e-6)
    assert jnp.allclose(l12, jnp.mean(jnp.abs(a - b)), rtol=1e-5, atol=1e-6)

    # Element count not divisible by 128 -> lane zero-pad path (pads contribute 0).
    c = jax.random.normal(k5, (3, 5, 7), dtype=jnp.float32)
    d = jax.random.normal(k6, (3, 5, 7), dtype=jnp.float32)
    mse3 = jax.block_until_ready(per_pixel_loss(c, d, loss_type="mse"))
    assert jnp.allclose(mse3, jnp.mean((c - d) ** 2), rtol=1e-5, atol=1e-6)

    # bf16 inputs stream at half the HBM bytes; kernel does f32 math per chunk.
    xb, yb = x.astype(jnp.bfloat16), y.astype(jnp.bfloat16)
    mse_bf = jax.block_until_ready(per_pixel_loss(xb, yb, loss_type="mse"))
    mse_bf_ref = jnp.mean((xb.astype(jnp.float32) - yb.astype(jnp.float32)) ** 2)
    assert jnp.allclose(mse_bf, mse_bf_ref, rtol=1e-5, atol=1e-6)

    print("KERNEL_OK")
</pallas_src>

<mosaic_0001>
module attributes {stable_mosaic.version = 11 : i64} {
  func.func @_per_pixel_loss_kernel(%arg0: i32, %arg1: i32, %arg2: memref<1xi32, #tpu.memory_space<smem>>, %arg3: memref<16x128xf32, #tpu.memory_space<vmem>>, %arg4: memref<16x128xf32, #tpu.memory_space<vmem>>, %arg5: memref<1x128xf32, #tpu.memory_space<vmem>>, %arg6: memref<1x128xf32, #tpu.memory_space<vmem>>) attributes {dimension_semantics = [#tpu.dimension_semantics<parallel>, #tpu.dimension_semantics<arbitrary>], iteration_bounds = array<i64: 1, 1>, scalar_prefetch = 1 : i64, scratch_operands = 1 : i64, tpu.core_type = #tpu.core_type<tc>, window_params = [{transform_indices = @transform_0, window_bounds = array<i64: 16, 128>}, {transform_indices = @transform_1, window_bounds = array<i64: 16, 128>}, {transform_indices = @transform_2, window_bounds = array<i64: 1, 128>}]} {
    %c0_i32 = arith.constant 0 : i32
    %0 = arith.cmpi eq, %arg1, %c0_i32 : i32
    %1 = arith.extui %0 : i1 to i32
    %c0_i32_0 = arith.constant 0 : i32
    %2 = arith.cmpi ne, %1, %c0_i32_0 : i32
    scf.if %2 {
      %cst = arith.constant 0.000000e+00 : f32
      %17 = vector.broadcast %cst : f32 to vector<1x128xf32>
      %c0_6 = arith.constant 0 : index
      %c0_7 = arith.constant 0 : index
      %18 = vector.load %arg6[%c0_6, %c0_7] : memref<1x128xf32, #tpu.memory_space<vmem>>, vector<1x128xf32>
      tpu.vector_store %arg6[%c0_6, %c0_7], %17 {strides = array<i32>} : memref<1x128xf32, #tpu.memory_space<vmem>>, vector<1x128xf32>,
    } else {
    }
    %c0 = arith.constant 0 : index
    %3 = memref.load %arg2[%c0] : memref<1xi32, #tpu.memory_space<smem>>
    %c1_i32 = arith.constant 1 : i32
    %4 = arith.muli %arg0, %c1_i32 : i32
    %5 = arith.addi %4, %arg1 : i32
    %c16_i32 = arith.constant 16 : i32
    %6 = arith.muli %5, %c16_i32 : i32
    %c16_i32_1 = arith.constant 16 : i32
    %7 = arith.addi %6, %c16_i32_1 : i32
    %8 = arith.cmpi sle, %7, %3 : i32
    %9 = arith.extui %8 : i1 to i32
    %c0_i32_2 = arith.constant 0 : i32
    %10 = arith.cmpi ne, %9, %c0_i32_2 : i32
    scf.if %10 {
      %c0_i32_6 = arith.constant 0 : i32
      %c1_i32_7 = arith.constant 1 : i32
      %17 = arith.muli %c0_i32_6, %c1_i32_7 : i32
      %c0_i32_8 = arith.constant 0 : i32
      %18 = arith.addi %c0_i32_8, %17 : i32
      %c16_i32_9 = arith.constant 16 : i32
      %19 = arith.muli %18, %c16_i32_9 : i32
      %20 = tpu.assume_multiple %19, 16 : i32
      %21 = arith.index_cast %20 : i32 to index
      %c0_10 = arith.constant 0 : index
      %22 = vector.load %arg3[%21, %c0_10] : memref<16x128xf32, #tpu.memory_space<vmem>>, vector<16x128xf32>
      %23 = arith.index_cast %20 : i32 to index
      %c0_11 = arith.constant 0 : index
      %24 = vector.load %arg4[%23, %c0_11] : memref<16x128xf32, #tpu.memory_space<vmem>>, vector<16x128xf32>
      %25 = arith.subf %22, %24 : vector<16x128xf32>
      %26 = arith.mulf %25, %25 : vector<16x128xf32>
      %c0_12 = arith.constant 0 : index
      %c0_13 = arith.constant 0 : index
      %27 = vector.load %arg6[%c0_12, %c0_13] : memref<1x128xf32, #tpu.memory_space<vmem>>, vector<1x128xf32>
      %cst = arith.constant dense<0.000000e+00> : vector<128xf32>
      %28 = vector.multi_reduction <add>, %26, %cst [0] : vector<16x128xf32> to vector<128xf32>
      %29 = vector.shape_cast %28 : vector<128xf32> to vector<1x128xf32>
      %30 = arith.addf %27, %29 : vector<1x128xf32>
      %c0_14 = arith.constant 0 : index
      %c0_15 = arith.constant 0 : index
      %31 = vector.load %arg6[%c0_14, %c0_15] : memref<1x128xf32, #tpu.memory_space<vmem>>, vector<1x128xf32>
      tpu.vector_store %arg6[%c0_14, %c0_15], %30 {strides = array<i32>} : memref<1x128xf32, #tpu.memory_space<vmem>>, vector<1x128xf32>,
      %c1_i32_16 = arith.constant 1 : i32
    } else {
    }
    %true = arith.constant true
    %11 = arith.xori %8, %true : i1
    %12 = arith.extui %11 : i1 to i32
    %c0_i32_3 = arith.constant 0 : i32
    %13 = arith.cmpi ne, %12, %c0_i32_3 : i32
    scf.if %13 {
      %c0_i32_6 = arith.constant 0 : i32
      %c1_i32_7 = arith.constant 1 : i32
      %17 = arith.muli %c0_i32_6, %c1_i32_7 : i32
      %c0_i32_8 = arith.constant 0 : i32
      %18 = arith.addi %c0_i32_8, %17 : i32
      %c16_i32_9 = arith.constant 16 : i32
      %19 = arith.muli %18, %c16_i32_9 : i32
      %20 = tpu.assume_multiple %19, 16 : i32
      %21 = arith.index_cast %20 : i32 to index
      %c0_10 = arith.constant 0 : index
      %22 = vector.load %arg3[%21, %c0_10] : memref<16x128xf32, #tpu.memory_space<vmem>>, vector<16x128xf32>
      %23 = arith.index_cast %20 : i32 to index
      %c0_11 = arith.constant 0 : index
      %24 = vector.load %arg4[%23, %c0_11] : memref<16x128xf32, #tpu.memory_space<vmem>>, vector<16x128xf32>
      %25 = arith.subf %22, %24 : vector<16x128xf32>
      %26 = arith.mulf %25, %25 : vector<16x128xf32>
      %27 = arith.addi %6, %20 : i32
      %28 = tpu.iota {dimensions = array<i32: 0>} : vector<16x128xi32>
      %29 = vector.broadcast %27 : i32 to vector<16x128xi32>
      %30 = arith.addi %29, %28 : vector<16x128xi32>
      %31 = vector.broadcast %3 : i32 to vector<16x128xi32>
      %32 = arith.cmpi slt, %30, %31 : vector<16x128xi32>
      %cst = arith.constant 0.000000e+00 : f32
      %33 = vector.broadcast %cst : f32 to vector<16x128xf32>
      %34 = arith.select %32, %26, %33 : vector<16x128xi1>, vector<16x128xf32>
      %c0_12 = arith.constant 0 : index
      %c0_13 = arith.constant 0 : index
      %35 = vector.load %arg6[%c0_12, %c0_13] : memref<1x128xf32, #tpu.memory_space<vmem>>, vector<1x128xf32>
      %cst_14 = arith.constant dense<0.000000e+00> : vector<128xf32>
      %36 = vector.multi_reduction <add>, %34, %cst_14 [0] : vector<16x128xf32> to vector<128xf32>
      %37 = vector.shape_cast %36 : vector<128xf32> to vector<1x128xf32>
      %38 = arith.addf %35, %37 : vector<1x128xf32>
      %c0_15 = arith.constant 0 : index
      %c0_16 = arith.constant 0 : index
      %39 = vector.load %arg6[%c0_15, %c0_16] : memref<1x128xf32, #tpu.memory_space<vmem>>, vector<1x128xf32>
      tpu.vector_store %arg6[%c0_15, %c0_16], %38 {strides = array<i32>} : memref<1x128xf32, #tpu.memory_space<vmem>>, vector<1x128xf32>,
      %c1_i32_17 = arith.constant 1 : i32
    } else {
    }
    %c0_i32_4 = arith.constant 0 : i32
    %14 = arith.cmpi eq, %arg1, %c0_i32_4 : i32
    %15 = arith.extui %14 : i1 to i32
    %c0_i32_5 = arith.constant 0 : i32
    %16 = arith.cmpi ne, %15, %c0_i32_5 : i32
    scf.if %16 {
      %c0_6 = arith.constant 0 : index
      %c0_7 = arith.constant 0 : index
      %17 = vector.load %arg6[%c0_6, %c0_7] : memref<1x128xf32, #tpu.memory_space<vmem>>, vector<1x128xf32>
      %c0_8 = arith.constant 0 : index
      %c0_9 = arith.constant 0 : index
      %18 = vector.load %arg5[%c0_8, %c0_9] : memref<1x128xf32, #tpu.memory_space<vmem>>, vector<1x128xf32>
      tpu.vector_store %arg5[%c0_8, %c0_9], %17 {strides = array<i32>} : memref<1x128xf32, #tpu.memory_space<vmem>>, vector<1x128xf32>,
    } else {
    }
    return
  }
  func.func @transform_0(%arg0: i32, %arg1: i32, %arg2: memref<1xi32, #tpu.memory_space<smem>>) -> (i32, i32) {
    %c1_i32 = arith.constant 1 : i32
    %0 = arith.muli %arg0, %c1_i32 : i32
    %1 = arith.addi %0, %arg1 : i32
    %c0_i32 = arith.constant 0 : i32
    %2 = arith.minsi %1, %c0_i32 : i32
    %c0_i32_0 = arith.constant 0 : i32
    %c0_i32_1 = arith.constant 0 : i32
    return %2, %c0_i32_0 : i32, i32
  }
  func.func @transform_1(%arg0: i32, %arg1: i32, %arg2: memref<1xi32, #tpu.memory_space<smem>>) -> (i32, i32) {
    %c1_i32 = arith.constant 1 : i32
    %0 = arith.muli %arg0, %c1_i32 : i32
    %1 = arith.addi %0, %arg1 : i32
    %c0_i32 = arith.constant 0 : i32
    %2 = arith.minsi %1, %c0_i32 : i32
    %c0_i32_0 = arith.constant 0 : i32
    %c0_i32_1 = arith.constant 0 : i32
    return %2, %c0_i32_0 : i32, i32
  }
  func.func @transform_2(%arg0: i32, %arg1: i32, %arg2: memref<1xi32, #tpu.memory_space<smem>>) -> (i32, i32) {
    %c0_i32 = arith.constant 0 : i32
    %c0_i32_0 = arith.constant 0 : i32
    return %arg0, %c0_i32 : i32, i32
  }
}

</mosaic_0001>

<llo_original>
// kernel: tpu_custom_call.1
$region0: #{tpu_custom_call.1}
  #allocation0 [shape = 'u32[]', space=smem, size = 0x4, offset = 0x4, fixed_abs, tag = 'smem constant byte address 0x4 - core index']
  #allocation1 [shape = 'u32[144,128]{1,0:T(1,128)}', space=vmem, size = 0x12000, scoped, tag = 'internal scratch']
  #allocation2 [shape = 'f32[1,128]{1,0:T(1,128)}', space=vmem, size = 0x200, scoped, tag = 'scratch operand']
  #allocation3 [shape = 's32[1]{0}', space=sflag, size = 0x4, scoped, tag = 'scoped memory for tpu_custom_call.1']
  #allocation4 [shape = 's32[1]{0:T(128)S(6)}', space=smem, size = 0x200, scoped, tag = 'prefetched SMEM operand 0']
  %s0 = inlined_call_operand.<no memory space> [shape: s32[1], index: 0, kind: input, shape index: {}]
  %s1 = inlined_call_operand.hbm [shape: f32[16,128], index: 1, kind: input, shape index: {}]
  %s2 = inlined_call_operand.hbm [shape: f32[16,128], index: 2, kind: input, shape index: {}]
  %s3 = inlined_call_operand.hbm [shape: f32[1,128], index: 3, kind: output, shape index: {}]
  %s4 = sld [smem:[#allocation0]]
  $region42: #{tpu_custom_call.1} parent=0
    _
  %s6 = ssub.s32 1, %s4
  %s7 = scalar_select 0, %s6, %s4
  %8 = sst [smem:[#allocation4]] %s0
  $region1: #{tpu_custom_call.1} parent=0
    #allocation5 [shape = 'u8[8192]{0}', space=vmem, size = 0x2000, scoped, tag = 'input window, operand 1, single buffered']
    #allocation6 [shape = 's32[1]{0}', space=sflag, size = 0x4, scoped, tag = 'scoped memory for tpu_custom_call.1']
    #allocation7 [shape = 's32[1]{0}', space=sflag, size = 0x4, scoped, tag = 'scoped memory for tpu_custom_call.1']
    #allocation8 [shape = 'u8[8192]{0}', space=vmem, size = 0x2000, scoped, tag = 'input window, operand 2, single buffered']
    #allocation9 [shape = 's32[1]{0}', space=sflag, size = 0x4, scoped, tag = 'scoped memory for tpu_custom_call.1']
    #allocation10 [shape = 'u8[512]{0}', space=vmem, size = 0x400, scoped, tag = 'output window, operand 0, single buffered']
    %9 = vsyncpa [#allocation6], 0
    %10 = vsyncpa [#allocation9], 0
    %11 = vsyncpa [#allocation7], 0
    // Predicated region
    $region2: #{tpu_custom_call.1} parent=1 // pred_check
      _
    $region3: #{tpu_custom_call.1} parent=1 // pred_check_branch
      %13 = sbr.rel (0) target = $region5
    $region4: #{tpu_custom_call.1} parent=1 // pred_region
      %s14 = sadd.s32 0, 0
      %p15 = scmp.lt.s32.totalorder %s14, 0
      %s16 = scalar_select %p15, %s14, 0
      %s17 = smul.u32 2, %s16
      %s19 = ssub.s32 256, 256
      %20 = vsyncadd [#allocation6], %s19
      %s21 = smul.addr %s17, 128
      %s22 = scalar_lea.hbm %s1, %s21
      %s23 = sshll.u32 [#allocation5], 4
      %s24 = int_to_ptr.vmem [resolvable:$true] %s23
      %29 = dma.hbm_to_vmem [thread:$0]  %s22, 256, %s24, [#allocation6], 128, 128, 8
    $region5: #{tpu_custom_call.1} parent=1 // pred_fallthru
      _
    // Predicated region
    $region6: #{tpu_custom_call.1} parent=1 // pred_check
      _
    $region7: #{tpu_custom_call.1} parent=1 // pred_check_branch
      %31 = sbr.rel (0) target = $region9
    $region8: #{tpu_custom_call.1} parent=1 // pred_region
      %s32 = sadd.s32 0, 0
      %p33 = scmp.lt.s32.totalorder %s32, 0
      %s34 = scalar_select %p33, %s32, 0
      %s35 = smul.u32 2, %s34
      %s37 = ssub.s32 256, 256
      %38 = vsyncadd [#allocation9], %s37
      %s39 = smul.addr %s35, 128
      %s40 = scalar_lea.hbm %s2, %s39
      %s41 = sshll.u32 [#allocation8], 4
      %s42 = int_to_ptr.vmem [resolvable:$true] %s41
      %47 = dma.hbm_to_vmem [thread:$0]  %s40, 256, %s42, [#allocation9], 128, 128, 8
    $region9: #{tpu_custom_call.1} parent=1 // pred_fallthru
      _
    // Predicated region
    $region10: #{tpu_custom_call.1} parent=1 // pred_check
      _
    $region11: #{tpu_custom_call.1} parent=1 // pred_check_branch
      %49 = sbr.rel (0) target = $region13
    $region12: #{tpu_custom_call.1} parent=1 // pred_region
      %50 = dma.done [#allocation6], 256
    $region13: #{tpu_custom_call.1} parent=1 // pred_fallthru
      _
    // Predicated region
    $region14: #{tpu_custom_call.1} parent=1 // pred_check
      _
    $region15: #{tpu_custom_call.1} parent=1 // pred_check_branch
      %52 = sbr.rel (0) target = $region17
    $region16: #{tpu_custom_call.1} parent=1 // pred_region
      %53 = dma.done [#allocation9], 256
    $region17: #{tpu_custom_call.1} parent=1 // pred_fallthru
      _
    %s54 = sadd.s32 0, 0
    %p55 = scmp.lt.s32.totalorder %s54, 0
    %s56 = scalar_select %p55, %s54, 0
    %s57 = smul.u32 2, %s56
    %s58 = sadd.s32 0, 0
    %p59 = scmp.lt.s32.totalorder %s58, 0
    %s60 = scalar_select %p59, %s58, 0
    %s61 = smul.u32 2, %s60
    %p62 = scmp.eq.s32.totalorder 0, 0
    // Predicated region
    $region18: #{tpu_custom_call.1} parent=1 // pred_check
      %p63 = pneg %p62
    $region19: #{tpu_custom_call.1} parent=1 // pred_check_branch
      %65 = sbr.rel (%p63) target = $region21
    $region20: #{tpu_custom_call.1} parent=1 // pred_region
      %66 = vst [vmem:[#allocation2] sm:$0x1] 0.0
    $region21: #{tpu_custom_call.1} parent=1 // pred_fallthru
      _
    %s67 = sld [smem:[#allocation4]]
    %s68 = sadd.s32 0, 0
    %s69 = smul.u32 %s68, 16
    %s70 = sadd.s32 %s69, 16
    %p71 = scmp.le.s32.totalorder %s70, %s67
    // Predicated region
    $region22: #{tpu_custom_call.1} parent=1 // pred_check
      %p72 = pneg %p71
    $region23: #{tpu_custom_call.1} parent=1 // pred_check_branch
      %74 = sbr.rel (%p72) target = $region25
    $region24: #{tpu_custom_call.1} parent=1 // pred_region
      %v75 = vld [vmem:[#allocation5] sm:$0xff]
      %v76 = vld [vmem:[#allocation5 + $0x8] sm:$0xff]
      %v77 = vld [vmem:[#allocation8] sm:$0xff]
      %v78 = vld [vmem:[#allocation8 + $0x8] sm:$0xff]
      %v79 = vsub.f32 %v75, %v77
      %v80 = vsub.f32 %v76, %v78
      %v81 = vmul.f32 %v79, %v79
      %v82 = vmul.f32 %v80, %v80
      %v83 = vld [vmem:[#allocation2] sm:$0x1]
      %v84 = vadd.f32 %v81, %v82
      %v85 = vrot.slane %v84, 4
      %v86 = vadd.f32 %v84, %v85
      %v87 = vrot.slane %v86, 2
      %v88 = vadd.f32 %v86, %v87
      %v89 = vrot.slane %v88, 1
      %v90 = vadd.f32 %v88, %v89
      %v91 = vadd.f32 %v83, %v90
      %92 = vst [vmem:[#allocation2] sm:$0x1] %v91
    $region25: #{tpu_custom_call.1} parent=1 // pred_fallthru
      _
    %p93 = scmp.gt.s32.totalorder %s70, %s67
    // Predicated region
    $region26: #{tpu_custom_call.1} parent=1 // pred_check
      %p94 = pneg %p93
    $region27: #{tpu_custom_call.1} parent=1 // pred_check_branch
      %96 = sbr.rel (%p94) target = $region29
    $region28: #{tpu_custom_call.1} parent=1 // pred_region
      %v97 = vld [vmem:[#allocation5] sm:$0xff]
      %v98 = vld [vmem:[#allocation5 + $0x8] sm:$0xff]
      %v99 = vld [vmem:[#allocation8] sm:$0xff]
      %v100 = vld [vmem:[#allocation8 + $0x8] sm:$0xff]
      %v101 = vsub.f32 %v97, %v99
      %v102 = vsub.f32 %v98, %v100
      %v103 = vmul.f32 %v101, %v101
      %v104 = vmul.f32 %v102, %v102
      %s105 = sadd.s32 %s69, 0
      %v106 = vlaneseq
      %v107 = vshrl.u32 %v106, 7
      %v108 = vadd.s32 %v107, 8
      %v109 = vstv %s105
      %v110 = vadd.s32 %v109, %v107
      %v111 = vadd.s32 %v109, %v108
      %v112 = vstv %s67
      %vm113 = vcmp.lt.s32.totalorder %v110, %v112
      %vm114 = vcmp.lt.s32.totalorder %v111, %v112
      %v115 = vsel %vm113, %v103, 0.0
      %v116 = vsel %vm114, %v104, 0.0
      %v117 = vld [vmem:[#allocation2] sm:$0x1]
      %v118 = vadd.f32 %v115, %v116
      %v119 = vrot.slane %v118, 4
      %v120 = vadd.f32 %v118, %v119
      %v121 = vrot.slane %v120, 2
      %v122 = vadd.f32 %v120, %v121
      %v123 = vrot.slane %v122, 1
      %v124 = vadd.f32 %v122, %v123
      %v125 = vadd.f32 %v117, %v124
      %126 = vst [vmem:[#allocation2] sm:$0x1] %v125
    $region29: #{tpu_custom_call.1} parent=1 // pred_fallthru
      _
    // Predicated region
    $region30: #{tpu_custom_call.1} parent=1 // pred_check
      %p127 = pneg %p62
    $region31: #{tpu_custom_call.1} parent=1 // pred_check_branch
      %129 = sbr.rel (%p127) target = $region33
    $region32: #{tpu_custom_call.1} parent=1 // pred_region
      %v130 = vld [vmem:[#allocation2] sm:$0x1]
      %131 = vst [vmem:[#allocation10] sm:$0x1] %v130
    $region33: #{tpu_custom_call.1} parent=1 // pred_fallthru
      _
    // Predicated region
    $region34: #{tpu_custom_call.1} parent=1 // pred_check
      _
    $region35: #{tpu_custom_call.1} parent=1 // pred_check_branch
      %133 = sbr.rel (0) target = $region37
    $region36: #{tpu_custom_call.1} parent=1 // pred_region
      %s135 = ssub.s32 16, 16
      %136 = vsyncadd [#allocation7], %s135
      %s138 = sshll.u32 [#allocation10], 4
      %s139 = int_to_ptr.vmem [resolvable:$true] %s138
      %141 = dma.vmem_to_hbm [thread:$0]  %s139, 16, %s3, [#allocation7]
    $region37: #{tpu_custom_call.1} parent=1 // pred_fallthru
      _
    // Predicated region
    $region38: #{tpu_custom_call.1} parent=1 // pred_check
      _
    $region39: #{tpu_custom_call.1} parent=1 // pred_check_branch
      %143 = sbr.rel (0) target = $region41
    $region40: #{tpu_custom_call.1} parent=1 // pred_region
      %144 = dma.done [#allocation7], 16
    $region41: #{tpu_custom_call.1} parent=1 // pred_fallthru
      _
    %145 = vsyncpa [#allocation6], 1
    %146 = vsyncpa [#allocation9], 1
    %147 = vsyncpa [#allocation7], 1

</llo_original>
